<compile_context>
chip_gen: v6e
topology: v6e:2x2x1
jax: 0.10.0
libtpu: 0.0.40
codegen_flags: <defaults>
</compile_context>

<pallas_src>
import functools

import jax
import jax.numpy as jnp
from jax import lax
from jax.experimental import pallas as pl
from jax.experimental.pallas import tpu as pltpu


CHUNK = 512  # lanes per packed batch row (multiple of 128)


def learned_fn_kernel(x_ref, w1_ref, b1_ref, w2_ref, b2_ref, w3_ref, b3_ref, o_ref):
    # x_ref / o_ref: (block_rows, CHUNK).  w1/b1/w2/b2 arrive pre-scaled by 0.5 so the
    # sigmoidal is a bare tanh.
    w1 = w1_ref[...]        # (20, 1)
    b1 = b1_ref[...]        # (20, 1)
    w2 = w2_ref[...]        # (10, 20)
    b2 = b2_ref[...]        # (10, 1)
    w3 = w3_ref[...]        # (10, 1)
    b3 = b3_ref[...]        # (1, 1)

    def row(r, carry):
        x = x_ref[pl.ds(r, 1), :]                                    # (1, CHUNK) batch on lanes
        h1 = jnp.tanh(w1 * x + b1)                                   # (20, CHUNK)  VPU + EUP
        h2 = jnp.tanh(jnp.dot(w2, h1,
                              preferred_element_type=jnp.float32) + b2)  # (10, CHUNK)  MXU + EUP
        o_ref[pl.ds(r, 1), :] = jnp.sum(w3 * h2, axis=0, keepdims=True) + b3  # (1, CHUNK)
        return carry

    lax.fori_loop(0, x_ref.shape[0], row, 0)


def _block_rows(rows, block_b):
    """Rows per grid block: multiple of 8 (or == rows), VMEM-capped, >=4 grid steps."""
    if rows <= 8:
        return rows
    cap = max(8, block_b // CHUNK)
    tgt = min(cap, pl.cdiv(rows, 4))
    return max(8, (tgt // 8) * 8)


@functools.partial(jax.jit, static_argnames=("block_b",))
def learned_fn(x, w1, b1, w2, b2, w3, b3, *, block_b=65536):
    """x: (N, 1) f32. Params in PyTorch nn.Linear layout: W (out, in), b (out,)."""
    n = x.shape[0]
    rows = pl.cdiv(n, CHUNK)
    n_pad = rows * CHUNK

    xf = jnp.reshape(x, (n,))
    if n_pad != n:                       # only the ragged tail is ever padded
        xf = jnp.pad(xf, (0, n_pad - n))
    x2d = jnp.reshape(xf, (rows, CHUNK))  # dense (8,128)-tileable batch slab

    # Fold the tanh(v/2) argument scale into the layers feeding an activation.
    w1c = 0.5 * jnp.reshape(w1, (20, 1))
    b1c = 0.5 * jnp.reshape(b1, (20, 1))
    w2s = 0.5 * w2                        # (10, 20)
    b2c = 0.5 * jnp.reshape(b2, (10, 1))
    w3c = jnp.reshape(w3, (10, 1))        # W3 is (1, 10)
    b3c = jnp.reshape(b3, (1, 1))

    br = _block_rows(rows, block_b)
    grid = (pl.cdiv(rows, br),)           # ragged last block handled by Pallas

    const = lambda shape: pl.BlockSpec(shape, lambda i: (0,) * len(shape))

    out = pl.pallas_call(
        learned_fn_kernel,
        out_shape=jax.ShapeDtypeStruct((rows, CHUNK), jnp.float32),
        grid=grid,
        in_specs=[
            pl.BlockSpec((br, CHUNK), lambda i: (i, 0)),   # x: lane- and sublane-dense block
            const((20, 1)), const((20, 1)),                # W1, b1 (resident across steps)
            const((10, 20)), const((10, 1)),               # W2, b2
            const((10, 1)), const((1, 1)),                 # W3, b3
        ],
        out_specs=pl.BlockSpec((br, CHUNK), lambda i: (i, 0)),
        compiler_params=pltpu.CompilerParams(
            dimension_semantics=("parallel",),             # both TCs on v7x; no-op on v5e/v6e
        ),
    )(x2d, w1c, b1c, w2s, b2c, w3c, b3c)

    return jnp.reshape(jnp.reshape(out, (n_pad,))[:n], (n, 1))


def init_params(key):
    """nn.Linear default init U(-1/sqrt(fan_in), 1/sqrt(fan_in)); W is (out, in), b is (out,)."""
    def linear(key, fan_in, fan_out):
        kw, kb = jax.random.split(key)
        bound = 1.0 / jnp.sqrt(float(fan_in))
        w = jax.random.uniform(kw, (fan_out, fan_in), jnp.float32, -bound, bound)
        b = jax.random.uniform(kb, (fan_out,), jnp.float32, -bound, bound)
        return w, b

    k1, k2, k3 = jax.random.split(key, 3)
    w1, b1 = linear(k1, 1, 20)
    w2, b2 = linear(k2, 20, 10)
    w3, b3 = linear(k3, 10, 1)
    return w1, b1, w2, b2, w3, b3


def reference(x, w1, b1, w2, b2, w3, b3):
    sig = lambda v: (1.0 - jnp.exp(-v)) / (1.0 + jnp.exp(-v))
    h = sig(x @ w1.T + b1)
    h = sig(h @ w2.T + b2)
    return h @ w3.T + b3


if __name__ == "__main__":
    key = jax.random.PRNGKey(0)
    kx, kp, kx2 = jax.random.split(key, 3)
    params = init_params(kp)

    # Small batch: single packed row, lane-padded tail.
    batch = 8
    x = jax.random.normal(kx, (batch, 1), jnp.float32)
    out = jax.block_until_ready(learned_fn(x, *params))
    ref = reference(x, *params)
    assert out.shape == (batch, 1)
    assert jnp.allclose(out, ref, atol=1e-5, rtol=1e-5)

    # Larger batch: grid > 1, ragged last row-block, ragged last lane chunk.
    batch2 = 9000
    x2 = jax.random.normal(kx2, (batch2, 1), jnp.float32)
    out2 = jax.block_until_ready(learned_fn(x2, *params, block_b=1024))
    ref2 = reference(x2, *params)
    assert out2.shape == (batch2, 1)
    assert jnp.allclose(out2, ref2, atol=1e-5, rtol=1e-5)

    print("KERNEL_OK")
</pallas_src>

<mosaic_0001>
module attributes {stable_mosaic.version = 11 : i64} {
  func.func @learned_fn_kernel(%arg0: i32, %arg1: memref<1x512xf32, #tpu.memory_space<vmem>>, %arg2: memref<20x1xf32, #tpu.memory_space<vmem>>, %arg3: memref<20x1xf32, #tpu.memory_space<vmem>>, %arg4: memref<10x20xf32, #tpu.memory_space<vmem>>, %arg5: memref<10x1xf32, #tpu.memory_space<vmem>>, %arg6: memref<10x1xf32, #tpu.memory_space<vmem>>, %arg7: memref<1x1xf32, #tpu.memory_space<vmem>>, %arg8: memref<1x512xf32, #tpu.memory_space<vmem>>) attributes {dimension_semantics = [#tpu.dimension_semantics<parallel>], iteration_bounds = array<i64: 1>, scalar_prefetch = 0 : i64, scratch_operands = 0 : i64, tpu.core_type = #tpu.core_type<tc>, window_params = [{transform_indices = @transform_0, window_bounds = array<i64: 1, 512>}, {pipeline_mode = #tpu.pipeline_mode<synchronous>, transform_indices = @transform_1, window_bounds = array<i64: 20, 1>}, {pipeline_mode = #tpu.pipeline_mode<synchronous>, transform_indices = @transform_2, window_bounds = array<i64: 20, 1>}, {pipeline_mode = #tpu.pipeline_mode<synchronous>, transform_indices = @transform_3, window_bounds = array<i64: 10, 20>}, {pipeline_mode = #tpu.pipeline_mode<synchronous>, transform_indices = @transform_4, window_bounds = array<i64: 10, 1>}, {pipeline_mode = #tpu.pipeline_mode<synchronous>, transform_indices = @transform_5, window_bounds = array<i64: 10, 1>}, {pipeline_mode = #tpu.pipeline_mode<synchronous>, transform_indices = @transform_6, window_bounds = array<i64: 1, 1>}, {transform_indices = @transform_7, window_bounds = array<i64: 1, 512>}]} {
    %c0 = arith.constant 0 : index
    %c0_0 = arith.constant 0 : index
    %0 = vector.load %arg2[%c0, %c0_0] : memref<20x1xf32, #tpu.memory_space<vmem>>, vector<20x1xf32>
    %c0_1 = arith.constant 0 : index
    %c0_2 = arith.constant 0 : index
    %1 = vector.load %arg3[%c0_1, %c0_2] : memref<20x1xf32, #tpu.memory_space<vmem>>, vector<20x1xf32>
    %c0_3 = arith.constant 0 : index
    %c0_4 = arith.constant 0 : index
    %2 = vector.load %arg4[%c0_3, %c0_4] : memref<10x20xf32, #tpu.memory_space<vmem>>, vector<10x20xf32>
    %c0_5 = arith.constant 0 : index
    %c0_6 = arith.constant 0 : index
    %3 = vector.load %arg5[%c0_5, %c0_6] : memref<10x1xf32, #tpu.memory_space<vmem>>, vector<10x1xf32>
    %c0_7 = arith.constant 0 : index
    %c0_8 = arith.constant 0 : index
    %4 = vector.load %arg6[%c0_7, %c0_8] : memref<10x1xf32, #tpu.memory_space<vmem>>, vector<10x1xf32>
    %c0_9 = arith.constant 0 : index
    %c0_10 = arith.constant 0 : index
    %5 = vector.load %arg7[%c0_9, %c0_10] : memref<1x1xf32, #tpu.memory_space<vmem>>, vector<1x1xf32>
    %c0_i32 = arith.constant 0 : i32
    %6 = arith.index_cast %c0_i32 : i32 to index
    %c0_11 = arith.constant 0 : index
    %7 = vector.load %arg1[%6, %c0_11] : memref<1x512xf32, #tpu.memory_space<vmem>>, vector<1x512xf32>
    %8 = vector.broadcast %0 : vector<20x1xf32> to vector<20x512xf32>
    %9 = vector.broadcast %7 : vector<1x512xf32> to vector<20x512xf32>
    %10 = arith.mulf %8, %9 : vector<20x512xf32>
    %11 = vector.broadcast %1 : vector<20x1xf32> to vector<20x512xf32>
    %12 = arith.addf %10, %11 : vector<20x512xf32>
    %13 = math.tanh %12 : vector<20x512xf32>
    %cst = arith.constant dense<0.000000e+00> : vector<10x512xf32>
    %14 = tpu.matmul %2, %13, %cst {dimension_numbers = #tpu.dot_dimension_numbers<[1], [0], [0], [1], [0, 0, 1, 1], [], []>} : vector<10x20xf32>, vector<20x512xf32>, vector<10x512xf32> -> vector<10x512xf32>
    %15 = vector.broadcast %3 : vector<10x1xf32> to vector<10x512xf32>
    %16 = arith.addf %14, %15 : vector<10x512xf32>
    %17 = math.tanh %16 : vector<10x512xf32>
    %18 = vector.broadcast %4 : vector<10x1xf32> to vector<10x512xf32>
    %19 = arith.mulf %18, %17 : vector<10x512xf32>
    %cst_12 = arith.constant dense<0.000000e+00> : vector<512xf32>
    %20 = vector.multi_reduction <add>, %19, %cst_12 [0] : vector<10x512xf32> to vector<512xf32>
    %21 = vector.shape_cast %20 : vector<512xf32> to vector<1x512xf32>
    %22 = vector.broadcast %5 : vector<1x1xf32> to vector<1x512xf32>
    %23 = arith.addf %21, %22 : vector<1x512xf32>
    %24 = arith.index_cast %c0_i32 : i32 to index
    %c0_13 = arith.constant 0 : index
    %25 = vector.load %arg8[%24, %c0_13] : memref<1x512xf32, #tpu.memory_space<vmem>>, vector<1x512xf32>
    tpu.vector_store %arg8[%24, %c0_13], %23 {strides = array<i32>} : memref<1x512xf32, #tpu.memory_space<vmem>>, vector<1x512xf32>,
    %c1_i32 = arith.constant 1 : i32
    return
  }
  func.func @transform_0(%arg0: i32) -> (i32, i32) {
    %c0_i32 = arith.constant 0 : i32
    %c0_i32_0 = arith.constant 0 : i32
    return %arg0, %c0_i32 : i32, i32
  }
  func.func @transform_1(%arg0: i32) -> (i32, i32) {
    %c0_i32 = arith.constant 0 : i32
    %c0_i32_0 = arith.constant 0 : i32
    %c0_i32_1 = arith.constant 0 : i32
    return %c0_i32, %c0_i32_0 : i32, i32
  }
  func.func @transform_2(%arg0: i32) -> (i32, i32) {
    %c0_i32 = arith.constant 0 : i32
    %c0_i32_0 = arith.constant 0 : i32
    %c0_i32_1 = arith.constant 0 : i32
    return %c0_i32, %c0_i32_0 : i32, i32
  }
  func.func @transform_3(%arg0: i32) -> (i32, i32) {
    %c0_i32 = arith.constant 0 : i32
    %c0_i32_0 = arith.constant 0 : i32
    %c0_i32_1 = arith.constant 0 : i32
    return %c0_i32, %c0_i32_0 : i32, i32
  }
  func.func @transform_4(%arg0: i32) -> (i32, i32) {
    %c0_i32 = arith.constant 0 : i32
    %c0_i32_0 = arith.constant 0 : i32
    %c0_i32_1 = arith.constant 0 : i32
    return %c0_i32, %c0_i32_0 : i32, i32
  }
  func.func @transform_5(%arg0: i32) -> (i32, i32) {
    %c0_i32 = arith.constant 0 : i32
    %c0_i32_0 = arith.constant 0 : i32
    %c0_i32_1 = arith.constant 0 : i32
    return %c0_i32, %c0_i32_0 : i32, i32
  }
  func.func @transform_6(%arg0: i32) -> (i32, i32) {
    %c0_i32 = arith.constant 0 : i32
    %c0_i32_0 = arith.constant 0 : i32
    %c0_i32_1 = arith.constant 0 : i32
    return %c0_i32, %c0_i32_0 : i32, i32
  }
  func.func @transform_7(%arg0: i32) -> (i32, i32) {
    %c0_i32 = arith.constant 0 : i32
    %c0_i32_0 = arith.constant 0 : i32
    return %arg0, %c0_i32 : i32, i32
  }
}

</mosaic_0001>

<llo_original>
// kernel: learned_fn.1
$region0: #{learned_fn.1}
  #allocation0 [shape = 'u32[]', space=smem, size = 0x4, offset = 0x4, fixed_abs, tag = 'smem constant byte address 0x4 - core index']
  #allocation1 [shape = 'u32[144,128]{1,0:T(1,128)}', space=vmem, size = 0x12000, scoped, tag = 'internal scratch']
  #allocation2 [shape = 'f32[1,1]{1,0:T(1,128)S(1)}', space=vmem, size = 0x200, scoped, tag = 'scoped memory for learned_fn.1']
  %s0 = inlined_call_operand.vmem [shape: f32[1,512], index: 0, kind: input, shape index: {}]
  %s1 = inlined_call_operand.vmem [shape: f32[20,1], index: 1, kind: input, shape index: {}]
  %s2 = inlined_call_operand.vmem [shape: f32[20,1], index: 2, kind: input, shape index: {}]
  %s3 = inlined_call_operand.vmem [shape: f32[10,20], index: 3, kind: input, shape index: {}]
  %s4 = inlined_call_operand.vmem [shape: f32[10,1], index: 4, kind: input, shape index: {}]
  %s5 = inlined_call_operand.vmem [shape: f32[10,1], index: 5, kind: input, shape index: {}]
  %s6 = inlined_call_operand.<no memory space> [shape: f32[1,1], index: 6, kind: input, shape index: {}]
  %s7 = inlined_call_operand.vmem [shape: f32[1,512], index: 7, kind: output, shape index: {}]
  %s8 = sld [smem:[#allocation0]]
  $region38: #{learned_fn.1} parent=0
    _
  %s10 = ssub.s32 1, %s8
  %s11 = scalar_select 0, %s10, %s8
  %v12 = vstv %s6
  %13 = vst [vmem:[#allocation2] sm:$0x1] %v12
  // Predicated region
  $region2: #{learned_fn.1} parent=0 // pred_check
    _
  $region3: #{learned_fn.1} parent=0 // pred_check_branch
    %15 = sbr.rel (0) target = $region5
  $region4: #{learned_fn.1} parent=0 // pred_region
    _
  $region5: #{learned_fn.1} parent=0 // pred_fallthru
    _
  // Predicated region
  $region6: #{learned_fn.1} parent=0 // pred_check
    _
  $region7: #{learned_fn.1} parent=0 // pred_check_branch
    %17 = sbr.rel (0) target = $region9
  $region8: #{learned_fn.1} parent=0 // pred_region
    _
  $region9: #{learned_fn.1} parent=0 // pred_fallthru
    _
  // Predicated region
  $region10: #{learned_fn.1} parent=0 // pred_check
    _
  $region11: #{learned_fn.1} parent=0 // pred_check_branch
    %19 = sbr.rel (0) target = $region13
  $region12: #{learned_fn.1} parent=0 // pred_region
    _
  $region13: #{learned_fn.1} parent=0 // pred_fallthru
    _
  // Predicated region
  $region14: #{learned_fn.1} parent=0 // pred_check
    _
  $region15: #{learned_fn.1} parent=0 // pred_check_branch
    %21 = sbr.rel (0) target = $region17
  $region16: #{learned_fn.1} parent=0 // pred_region
    _
  $region17: #{learned_fn.1} parent=0 // pred_fallthru
    _
  // Predicated region
  $region18: #{learned_fn.1} parent=0 // pred_check
    _
  $region19: #{learned_fn.1} parent=0 // pred_check_branch
    %23 = sbr.rel (0) target = $region21
  $region20: #{learned_fn.1} parent=0 // pred_region
    _
  $region21: #{learned_fn.1} parent=0 // pred_fallthru
    _
  // Predicated region
  $region22: #{learned_fn.1} parent=0 // pred_check
    _
  $region23: #{learned_fn.1} parent=0 // pred_check_branch
    %25 = sbr.rel (0) target = $region25
  $region24: #{learned_fn.1} parent=0 // pred_region
    _
  $region25: #{learned_fn.1} parent=0 // pred_fallthru
    _
  // Predicated region
  $region26: #{learned_fn.1} parent=0 // pred_check
    _
  $region27: #{learned_fn.1} parent=0 // pred_check_branch
    %27 = sbr.rel (0) target = $region29
  $region28: #{learned_fn.1} parent=0 // pred_region
    _
  $region29: #{learned_fn.1} parent=0 // pred_fallthru
    _
  %v28 = vld [vmem:[%s1] sm:$0xff]
  %v29 = vld [vmem:[%s1 + $0x8] sm:$0xff]
  %v30 = vld [vmem:[%s1 + $0x10] sm:$0xf]
  %v31 = vld [vmem:[%s2] sm:$0xff]
  %v32 = vld [vmem:[%s2 + $0x8] sm:$0xff]
  %v33 = vld [vmem:[%s2 + $0x10] sm:$0xf]
  %v34 = vld [vmem:[%s3] sm:$0xff]
  %v35 = vld [vmem:[%s3 + $0x8] sm:$0x3]
  %v36 = vld [vmem:[%s4] sm:$0xff]
  %v37 = vld [vmem:[%s4 + $0x8] sm:$0x3]
  %v38 = vld [vmem:[%s5] sm:$0xff]
  %v39 = vld [vmem:[%s5 + $0x8] sm:$0x3]
  %v40 = vld [vmem:[#allocation2] sm:$0x1]
  %v41 = vld [vmem:[%s0] sm:$0xf]
  %43 = vset.pattern.permute.xlu0 0
  %44 = vperm.xlu0 %43, %v28
  %v45 = vpop.permute.xlu0 %44
  %48 = vset.pattern.permute.xlu0 0
  %49 = vperm.xlu0 %48, %v29
  %v50 = vpop.permute.xlu0 %49
  %53 = vset.pattern.permute.xlu0 0
  %54 = vperm.xlu0 %53, %v30
  %v55 = vpop.permute.xlu0 %54
  %v58 = vlaneseq
  %v59 = vshrl.u32 %v58, 7
  %v60 = vsub.s32 0, %v59
  %v61 = vrot.slane %v41, %v60
  %v62 = vlaneseq
  %v63 = vshrl.u32 %v62, 7
  %v64 = vsub.s32 1, %v63
  %v65 = vrot.slane %v41, %v64
  %v66 = vlaneseq
  %v67 = vshrl.u32 %v66, 7
  %v68 = vsub.s32 2, %v67
  %v69 = vrot.slane %v41, %v68
  %v70 = vlaneseq
  %v71 = vshrl.u32 %v70, 7
  %v72 = vsub.s32 3, %v71
  %v73 = vrot.slane %v41, %v72
  %v78 = vmul.f32 %v45, %v61
  %v79 = vmul.f32 %v45, %v65
  %v80 = vmul.f32 %v45, %v69
  %v81 = vmul.f32 %v45, %v73
  %v82 = vmul.f32 %v50, %v61
  %v83 = vmul.f32 %v50, %v65
  %v84 = vmul.f32 %v50, %v69
  %v85 = vmul.f32 %v50, %v73
  %v86 = vmul.f32 %v55, %v61
  %v87 = vmul.f32 %v55, %v65
  %v88 = vmul.f32 %v55, %v69
  %v89 = vmul.f32 %v55, %v73
  %91 = vset.pattern.permute.xlu0 0
  %92 = vperm.xlu0 %91, %v31
  %v93 = vpop.permute.xlu0 %92
  %96 = vset.pattern.permute.xlu0 0
  %97 = vperm.xlu0 %96, %v32
  %v98 = vpop.permute.xlu0 %97
  %101 = vset.pattern.permute.xlu0 0
  %102 = vperm.xlu0 %101, %v33
  %v103 = vpop.permute.xlu0 %102
  %v105 = vadd.f32 %v78, %v93
  %v106 = vadd.f32 %v79, %v93
  %v107 = vadd.f32 %v80, %v93
  %v108 = vadd.f32 %v81, %v93
  %v109 = vadd.f32 %v82, %v98
  %v110 = vadd.f32 %v83, %v98
  %v111 = vadd.f32 %v84, %v98
  %v112 = vadd.f32 %v85, %v98
  %v113 = vadd.f32 %v86, %v103
  %v114 = vadd.f32 %v87, %v103
  %v115 = vadd.f32 %v88, %v103
  %v116 = vadd.f32 %v89, %v103
  %v117 = vtanh.pop %v105
  %v118 = vtanh.pop %v106
  %v119 = vtanh.pop %v107
  %v120 = vtanh.pop %v108
  %v121 = vtanh.pop %v109
  %v122 = vtanh.pop %v110
  %v123 = vtanh.pop %v111
  %v124 = vtanh.pop %v112
  %v125 = vtanh.pop %v113
  %v126 = vtanh.pop %v114
  %v127 = vtanh.pop %v115
  %v128 = vtanh.pop %v116
  %130 = vset.pattern.permute.xlu0 0
  %131 = vperm.xlu0 %130, %v36
  %v132 = vpop.permute.xlu0 %131
  %135 = vset.pattern.permute.xlu0 0
  %136 = vperm.xlu0 %135, %v37
  %v137 = vpop.permute.xlu0 %136
  %vm139 = vcmask 162816
  %v141 = vsel %vm139, %v34, 0
  %v144 = vsel %vm139, %v35, 0
  %vm146 = vcmask 1043456
  %v148 = vsel %vm146, %v125, 0
  %v151 = vsel %vm146, %v126, 0
  %v154 = vsel %vm146, %v127, 0
  %v157 = vsel %vm146, %v128, 0
  %159 = vmatprep.subr.mxu0 0.0
  %160 = vmatpush1.msra.mxu0 0.0
  %161 = vmatprep.subr.mxu0 0.0
  %162 = vmatpush1.msra.mxu0 0.0
  %163 = vmatprep.subr.mxu0 0.0
  %164 = vmatpush1.msra.mxu0 0.0
  %165 = vmatprep.subr.mxu0 0.0
  %166 = vmatpush1.msra.mxu0 0.0
  %167 = vmatprep.subr.mxu0 0.0
  %168 = vmatpush1.msra.mxu0 0.0
  %169 = vmatprep.subr.mxu0 0.0
  %170 = vmatpush1.msra.mxu0 0.0
  %171 = vmatprep.subr.mxu0 0.0
  %172 = vmatpush1.msra.mxu0 0.0
  %173 = vmatprep.subr.mxu0 0.0
  %174 = vmatpush1.msra.mxu0 0.0
  %175 = vmatprep.subr.mxu0 0.0
  %176 = vmatpush1.msra.mxu0 0.0
  %177 = vmatprep.subr.mxu0 0.0
  %178 = vmatpush1.msra.mxu0 0.0
  %179 = vmatprep.subr.mxu0 0.0
  %180 = vmatpush1.msra.mxu0 0.0
  %181 = vmatprep.subr.mxu0 0.0
  %182 = vmatpush1.msra.mxu0 0.0
  %183 = vmatprep.subr.mxu0 0.0
  %184 = vmatpush1.msra.mxu0 0.0
  %185 = vmatprep.subr.mxu0 %v151
  %186 = vmatpush1.msra.mxu0 %v148
  %187 = vmatprep.subr.mxu0 %v122
  %188 = vmatpush1.msra.mxu0 %v121
  %189 = vmatprep.subr.mxu0 %v118
  %190 = vmatpush1.msra.mxu0 %v117
  %191 = vmatprep.subr.mxu0 0.0
  %192 = vmatpush2.msra.mxu0 0.0
  %193 = vmatprep.subr.mxu0 0.0
  %194 = vmatpush2.msra.mxu0 0.0
  %195 = vmatprep.subr.mxu0 0.0
  %196 = vmatpush2.msra.mxu0 0.0
  %197 = vmatprep.subr.mxu0 0.0
  %198 = vmatpush2.msra.mxu0 0.0
  %199 = vmatprep.subr.mxu0 0.0
  %200 = vmatpush2.msra.mxu0 0.0
  %201 = vmatprep.subr.mxu0 0.0
  %202 = vmatpush2.msra.mxu0 0.0
  %203 = vmatprep.subr.mxu0 0.0
  %204 = vmatpush2.msra.mxu0 0.0
  %205 = vmatprep.subr.mxu0 0.0
  %206 = vmatpush2.msra.mxu0 0.0
  %207 = vmatprep.subr.mxu0 0.0
  %208 = vmatpush2.msra.mxu0 0.0
  %209 = vmatprep.subr.mxu0 0.0
  %210 = vmatpush2.msra.mxu0 0.0
  %211 = vmatprep.subr.mxu0 0.0
  %212 = vmatpush2.msra.mxu0 0.0
  %213 = vmatprep.subr.mxu0 0.0
  %214 = vmatpush2.msra.mxu0 0.0
  %215 = vmatprep.subr.mxu0 0.0
  %216 = vmatpush2.msra.mxu0 0.0
  %217 = vmatprep.subr.mxu0 0.0
  %218 = vmatpush2.msra.mxu0 0.0
  %219 = vmatprep.subr.mxu0 0.0
  %220 = vmatpush2.msra.mxu0 0.0
  %221 = vmatprep.subr.mxu0 0.0
  %222 = vmatpush2.msra.mxu0 0.0
  %223 = vmatprep.mubr.f32.mxu0 0.0
  %224 = vmatmul.mubr.f32.gmra.mxu0 %v141
  %v225 = vpop.f32.mrf.mxu0
  %v226 = vadd.f32 %v132, %v225
  %v227 = vpop.f32.mrf.mxu0
  %v228 = vadd.f32 %v132, %v227
  %229 = vmatprep.mubr.f32.mxu0 0.0
  %230 = vmatmul.mubr.f32.gmra.mxu0 %v144
  %v231 = vpop.f32.mrf.mxu0
  %v232 = vadd.f32 %v137, %v231
  %v233 = vpop.f32.mrf.mxu0
  %v234 = vadd.f32 %v137, %v233
  %235 = vdwg.mxu0
  %236 = vmatprep.subr.mxu0 0.0
  %237 = vmatpush1.msra.mxu0 0.0
  %238 = vmatprep.subr.mxu0 0.0
  %239 = vmatpush1.msra.mxu0 0.0
  %240 = vmatprep.subr.mxu0 0.0
  %241 = vmatpush1.msra.mxu0 0.0
  %242 = vmatprep.subr.mxu0 0.0
  %243 = vmatpush1.msra.mxu0 0.0
  %244 = vmatprep.subr.mxu0 0.0
  %245 = vmatpush1.msra.mxu0 0.0
  %246 = vmatprep.subr.mxu0 0.0
  %247 = vmatpush1.msra.mxu0 0.0
  %248 = vmatprep.subr.mxu0 0.0
  %249 = vmatpush1.msra.mxu0 0.0
  %250 = vmatprep.subr.mxu0 0.0
  %251 = vmatpush1.msra.mxu0 0.0
  %252 = vmatprep.subr.mxu0 0.0
  %253 = vmatpush1.msra.mxu0 0.0
  %254 = vmatprep.subr.mxu0 0.0
  %255 = vmatpush1.msra.mxu0 0.0
  %256 = vmatprep.subr.mxu0 0.0
  %257 = vmatpush1.msra.mxu0 0.0
  %258 = vmatprep.subr.mxu0 0.0
  %259 = vmatpush1.msra.mxu0 0.0
  %260 = vmatprep.subr.mxu0 0.0
  %261 = vmatpush1.msra.mxu0 0.0
  %262 = vmatprep.subr.mxu0 %v157
  %263 = vmatpush1.msra.mxu0 %v154
  %264 = vmatprep.subr.mxu0 %v124
  %265 = vmatpush1.msra.mxu0 %v123
  %266 = vmatprep.subr.mxu0 %v120
  %267 = vmatpush1.msra.mxu0 %v119
  %268 = vmatprep.subr.mxu0 0.0
  %269 = vmatpush2.msra.mxu0 0.0
  %270 = vmatprep.subr.mxu0 0.0
  %271 = vmatpush2.msra.mxu0 0.0
  %272 = vmatprep.subr.mxu0 0.0
  %273 = vmatpush2.msra.mxu0 0.0
  %274 = vmatprep.subr.mxu0 0.0
  %275 = vmatpush2.msra.mxu0 0.0
  %276 = vmatprep.subr.mxu0 0.0
  %277 = vmatpush2.msra.mxu0 0.0
  %278 = vmatprep.subr.mxu0 0.0
  %279 = vmatpush2.msra.mxu0 0.0
  %280 = vmatprep.subr.mxu0 0.0
  %281 = vmatpush2.msra.mxu0 0.0
  %282 = vmatprep.subr.mxu0 0.0
  %283 = vmatpush2.msra.mxu0 0.0
  %284 = vmatprep.subr.mxu0 0.0
  %285 = vmatpush2.msra.mxu0 0.0
  %286 = vmatprep.subr.mxu0 0.0
  %287 = vmatpush2.msra.mxu0 0.0
  %288 = vmatprep.subr.mxu0 0.0
  %289 = vmatpush2.msra.mxu0 0.0
  %290 = vmatprep.subr.mxu0 0.0
  %291 = vmatpush2.msra.mxu0 0.0
  %292 = vmatprep.subr.mxu0 0.0
  %293 = vmatpush2.msra.mxu0 0.0
  %294 = vmatprep.subr.mxu0 0.0
  %295 = vmatpush2.msra.mxu0 0.0
  %296 = vmatprep.subr.mxu0 0.0
  %297 = vmatpush2.msra.mxu0 0.0
  %298 = vmatprep.subr.mxu0 0.0
  %299 = vmatpush2.msra.mxu0 0.0
  %300 = vmatprep.mubr.f32.mxu0 0.0
  %301 = vmatmul.mubr.f32.gmra.mxu0 %v141
  %v302 = vpop.f32.mrf.mxu0
  %v303 = vadd.f32 %v132, %v302
  %v304 = vpop.f32.mrf.mxu0
  %v305 = vadd.f32 %v132, %v304
  %306 = vmatprep.mubr.f32.mxu0 0.0
  %307 = vmatmul.mubr.f32.gmra.mxu0 %v144
  %v308 = vpop.f32.mrf.mxu0
  %v309 = vadd.f32 %v137, %v308
  %v310 = vpop.f32.mrf.mxu0
  %v311 = vadd.f32 %v137, %v310
  %312 = vdwg.mxu0
  %v313 = vtanh.pop %v226
  %v314 = vtanh.pop %v228
  %v315 = vtanh.pop %v303
  %v316 = vtanh.pop %v305
  %v317 = vtanh.pop %v232
  %v318 = vtanh.pop %v234
  %v319 = vtanh.pop %v309
  %v320 = vtanh.pop %v311
  %322 = vset.pattern.permute.xlu0 0
  %323 = vperm.xlu0 %322, %v38
  %v324 = vpop.permute.xlu0 %323
  %327 = vset.pattern.permute.xlu0 0
  %328 = vperm.xlu0 %327, %v39
  %v329 = vpop.permute.xlu0 %328
  %v331 = vmul.f32 %v324, %v313
  %v332 = vmul.f32 %v324, %v314
  %v333 = vmul.f32 %v324, %v315
  %v334 = vmul.f32 %v324, %v316
  %v335 = vmul.f32 %v329, %v317
  %v336 = vmul.f32 %v329, %v318
  %v337 = vmul.f32 %v329, %v319
  %v338 = vmul.f32 %v329, %v320
  %vm339 = vcmask 1041408
  %v340 = vsel %vm339, %v335, 0.0
  %v341 = vadd.f32 %v331, %v340
  %v342 = vrot.slane %v341, 4
  %v343 = vadd.f32 %v341, %v342
  %v344 = vrot.slane %v343, 2
  %v345 = vadd.f32 %v343, %v344
  %v346 = vrot.slane %v345, 1
  %v347 = vadd.f32 %v345, %v346
  %v348 = vsel %vm339, %v336, 0.0
  %v349 = vadd.f32 %v332, %v348
  %v350 = vrot.slane %v349, 4
  %v351 = vadd.f32 %v349, %v350
  %v352 = vrot.slane %v351, 2
  %v353 = vadd.f32 %v351, %v352
  %v354 = vrot.slane %v353, 1
  %v355 = vadd.f32 %v353, %v354
  %v356 = vsel %vm339, %v337, 0.0
  %v357 = vadd.f32 %v333, %v356
  %v358 = vrot.slane %v357, 4
  %v359 = vadd.f32 %v357, %v358
  %v360 = vrot.slane %v359, 2
  %v361 = vadd.f32 %v359, %v360
  %v362 = vrot.slane %v361, 1
  %v363 = vadd.f32 %v361, %v362
  %v364 = vsel %vm339, %v338, 0.0
  %v365 = vadd.f32 %v334, %v364
  %v366 = vrot.slane %v365, 4
  %v367 = vadd.f32 %v365, %v366
  %v368 = vrot.slane %v367, 2
  %v369 = vadd.f32 %v367, %v368
  %v370 = vrot.slane %v369, 1
  %v371 = vadd.f32 %v369, %v370
  %373 = vset.pattern.permute.xlu0 0
  %374 = vperm.xlu0 %373, %v40
  %v375 = vpop.permute.xlu0 %374
  %v377 = vlaneseq
  %v378 = vshrl.u32 %v377, 7
  %v379 = vsub.s32 0, %v378
  %v380 = vrot.slane %v375, %v379
  %v381 = vadd.f32 %v347, %v380
  %v382 = vadd.f32 %v355, %v380
  %v383 = vadd.f32 %v363, %v380
  %v384 = vadd.f32 %v371, %v380
  %v389 = vcombine.low %v381, %v382
  %v390 = vcombine.low %v383, %v384
  %v392 = vunpack.c.l.s4 1966171168
  %v393 = vunpack.c.0.s8 %v392
  %v394 = vlaneseq
  %v395 = vshrl.u32 %v394, 7
  %v396 = vsub.s32 %v393, %v395
  %v397 = vrot.slane %v389, %v396
  %v399 = vunpack.c.l.s4 1966171168
  %v400 = vunpack.c.0.s8 %v399
  %v401 = vlaneseq
  %v402 = vshrl.u32 %v401, 7
  %v403 = vsub.s32 %v400, %v402
  %v404 = vrot.slane %v390, %v403
  %v405 = vcombine.low %v397, %v404
  %v407 = vunpack.c.l.s4 1966171168
  %v408 = vunpack.c.0.s8 %v407
  %v409 = vlaneseq
  %v410 = vshrl.u32 %v409, 7
  %v411 = vsub.s32 %v408, %v410
  %v412 = vrot.slane %v405, %v411
  %v414 = vlaneseq
  %vm415 = vcmp.ge.s32.totalorder %v414, 0
  %vm416 = vcmp.lt.s32.totalorder %v414, 512
  %vm417 = vmand %vm415, %vm416
  %418 = vst.msk [vmem:[%s7] sm:$0xf] %vm417, %v412
  // Predicated region
  $region30: #{learned_fn.1} parent=0 // pred_check
    _
  $region31: #{learned_fn.1} parent=0 // pred_check_branch
    %420 = sbr.rel (0) target = $region33
  $region32: #{learned_fn.1} parent=0 // pred_region
    _
  $region33: #{learned_fn.1} parent=0 // pred_fallthru
    _
  // Predicated region
  $region34: #{learned_fn.1} parent=0 // pred_check
    _
  $region35: #{learned_fn.1} parent=0 // pred_check_branch
    %422 = sbr.rel (0) target = $region37
  $region36: #{learned_fn.1} parent=0 // pred_region
    _
  $region37: #{learned_fn.1} parent=0 // pred_fallthru
    _

</llo_original>
